<compile_context>
chip_gen: v7x
topology: tpu7x:2x2x1
jax: 0.10.0
libtpu: 0.0.40
codegen_flags: <defaults>
</compile_context>

<pallas_src>
import functools

import jax
import jax.numpy as jnp
from jax import lax
from jax.experimental import pallas as pl
from jax.experimental.pallas import tpu as pltpu


def _round_up(v, m):
    return -(-v // m) * m


def _pick_block_batch(n, max_b=8):
    """Images per grid step: batch to amortise per-step overhead, preferring
    an even number of grid steps so both v7x TensorCores get work."""
    divisors = [b for b in range(1, min(n, max_b) + 1) if n % b == 0]
    even = [b for b in divisors if (n // b) % 2 == 0]
    return max(even) if even else max(divisors)


# ----------------------------- Pallas kernel --------------------------------

def _adapter_kernel(k, wid, wo, hw, off, bsz,
                    x_ref, w1_ref, s1_ref, b1_ref,
                    w2_ref, s2_ref, b2_ref, a_ref, o_ref):
    """conv -> BN1 -> ReLU -> convT -> BN2 -> ReLU -> *alpha for bsz images."""
    kk = k * k
    wc = off + hw                                    # canvas width

    # Validity mask over canvas columns: positions outside the stage-1 output
    # (flat left/right padding and the k-1 wrap-around columns of each image
    # row) must be exactly zero before they feed the transposed conv.
    u = lax.broadcasted_iota(jnp.int32, (1, wc), 1)
    valid = (u >= off) & (u < hw) & (((u - off) % wid) < wo)

    w1 = w1_ref[...]                                 # (mid_pad, kk*cin_pad)
    w2 = w2_ref[...]                                 # (cin,     kk*mid_pad)
    s1 = s1_ref[...]                                 # (mid_pad, 1)
    b1 = b1_ref[...]
    s2 = s2_ref[...]                                 # (cin, 1)
    b2 = b2_ref[...]
    alpha = a_ref[...]                               # (cin, 1)

    for b in range(bsz):                             # unrolled; bsz is small
        x = x_ref[b]                                 # (cin_pad, wx), pre-padded flat

        # ---- stage 1: Conv2d as ONE matmul (taps folded into contraction) ---
        taps1 = [x[:, p * wid + q: p * wid + q + wc]
                 for p in range(k) for q in range(k)]
        a1 = taps1[0] if kk == 1 else jnp.concatenate(taps1, axis=0)
        h = jnp.dot(w1, a1, preferred_element_type=jnp.float32)   # (mid_pad, wc)
        h = jnp.maximum(h * s1 + b1, 0.0)            # folded BN1 affine + ReLU
        canvas = jnp.where(valid, h, 0.0)            # zero pad / wrap columns

        # ---- stage 2: ConvTranspose2d as ONE matmul --------------------------
        taps2 = [canvas[:, p * wid + q: p * wid + q + hw]
                 for p in range(k) for q in range(k)]
        a2 = taps2[0] if kk == 1 else jnp.concatenate(taps2, axis=0)
        y = jnp.dot(w2, a2, preferred_element_type=jnp.float32)   # (cin, hw)
        y = jnp.maximum(y * s2 + b2, 0.0) * alpha    # folded BN2 + ReLU, then alpha
        o_ref[b] = y.astype(o_ref.dtype)


# ------------------------------- wrapper -------------------------------------

@functools.partial(jax.jit, static_argnames=("kernel_size",))
def special_adapter_v1(x, params, *, kernel_size):
    k = kernel_size
    n, cin, hgt, wid = x.shape
    mid = params["w1"].shape[0]
    assert hgt >= k and wid >= k, "kernel larger than input"
    ho, wo = hgt - k + 1, wid - k + 1
    assert wid - wo == k - 1          # flat-shift trick (stride=1, no padding)

    kk = k * k
    hw = hgt * wid
    off = (k - 1) * (wid + 1)         # flat offset of stage-1 output in canvas
    wc = off + hw                     # canvas width
    wx = 2 * off + hw                 # flat-padded input width
    cin_pad = _round_up(cin, 8)
    mid_pad = _round_up(mid, 8)
    eps = 1e-5

    # --- tiny host-side prep (single XLA fusion under jit) -------------------
    # Conv2d weight -> (mid_pad, k*k*cin_pad), tap-major / channel-minor in K.
    w1cat = jnp.transpose(params["w1"], (0, 2, 3, 1))              # (mid,k,k,cin)
    w1cat = jnp.pad(w1cat, ((0, mid_pad - mid), (0, 0), (0, 0),
                            (0, cin_pad - cin)))
    w1cat = w1cat.reshape(mid_pad, kk * cin_pad).astype(jnp.float32)

    # ConvTranspose2d weight -> flipped taps, (cin, k*k*mid_pad).
    wtf = jnp.flip(params["wt"], axis=(2, 3))                      # (mid,cin,k,k)
    w2cat = jnp.transpose(wtf, (1, 2, 3, 0))                       # (cin,k,k,mid)
    w2cat = jnp.pad(w2cat, ((0, 0), (0, 0), (0, 0), (0, mid_pad - mid)))
    w2cat = w2cat.reshape(cin, kk * mid_pad).astype(jnp.float32)

    # Fold conv biases + eval-mode BatchNorm into per-channel scale/bias.
    s1 = params["g1"] / jnp.sqrt(params["v1"] + eps)
    b1 = params["be1"] + (params["b1"] - params["m1"]) * s1
    s2 = params["g2"] / jnp.sqrt(params["v2"] + eps)
    b2 = params["be2"] + (params["bt"] - params["m2"]) * s2
    s1 = jnp.pad(s1, (0, mid_pad - mid)).reshape(mid_pad, 1).astype(jnp.float32)
    b1 = jnp.pad(b1, (0, mid_pad - mid)).reshape(mid_pad, 1).astype(jnp.float32)
    s2 = s2.reshape(cin, 1).astype(jnp.float32)
    b2 = b2.reshape(cin, 1).astype(jnp.float32)
    # alpha applied after the final ReLU inside the kernel (any-sign safe).
    alpha = jnp.broadcast_to(params["alpha"].reshape(1, 1).astype(jnp.float32),
                             (cin, 1))

    # Input: flatten; zero-pad channels to a multiple of 8 (full sublane tiles,
    # aligned in-kernel tap stacking) and zero-pad the flat axis by `off` on
    # each side (this doubles as the transposed-conv zero padding).
    x_flat = x.reshape(n, cin, hw).astype(jnp.float32)
    x_pad = jnp.pad(x_flat, ((0, 0), (0, cin_pad - cin), (off, off)))

    bsz = _pick_block_batch(n)
    kernel = functools.partial(_adapter_kernel, k, wid, wo, hw, off, bsz)

    out_flat = pl.pallas_call(
        kernel,
        out_shape=jax.ShapeDtypeStruct((n, cin, hw), jnp.float32),
        grid_spec=pltpu.PrefetchScalarGridSpec(
            num_scalar_prefetch=0,
            grid=(n // bsz,),
            in_specs=[
                pl.BlockSpec((bsz, cin_pad, wx), lambda i: (i, 0, 0)),    # x block
                pl.BlockSpec((mid_pad, kk * cin_pad), lambda i: (0, 0)),  # conv W
                pl.BlockSpec((mid_pad, 1), lambda i: (0, 0)),             # BN1 scale
                pl.BlockSpec((mid_pad, 1), lambda i: (0, 0)),             # BN1 bias
                pl.BlockSpec((cin, kk * mid_pad), lambda i: (0, 0)),      # convT W
                pl.BlockSpec((cin, 1), lambda i: (0, 0)),                 # BN2 scale
                pl.BlockSpec((cin, 1), lambda i: (0, 0)),                 # BN2 bias
                pl.BlockSpec((cin, 1), lambda i: (0, 0)),                 # alpha
            ],
            out_specs=pl.BlockSpec((bsz, cin, hw), lambda i: (i, 0, 0)),
        ),
        compiler_params=pltpu.CompilerParams(
            dimension_semantics=("parallel",)),   # batch blocks across TCs (v7x)
    )(x_pad, w1cat, s1, b1, w2cat, s2, b2, alpha)

    return out_flat.reshape(n, cin, hgt, wid)


# ------------------------- deterministic parameters ---------------------------

def init_params(key, in_planes, mid_planes, kernel_size):
    ks = jax.random.split(key, 12)
    fan1 = in_planes * kernel_size * kernel_size
    fan2 = mid_planes * kernel_size * kernel_size
    u = lambda k_, shape, bound: jax.random.uniform(k_, shape, jnp.float32,
                                                    -bound, bound)
    return {
        # Conv2d(in, mid, k)
        "w1": u(ks[0], (mid_planes, in_planes, kernel_size, kernel_size),
                1.0 / jnp.sqrt(fan1)),
        "b1": u(ks[1], (mid_planes,), 1.0 / jnp.sqrt(fan1)),
        # ConvTranspose2d(mid, in, k) -- weight shape (mid, in, k, k)
        "wt": u(ks[2], (mid_planes, in_planes, kernel_size, kernel_size),
                1.0 / jnp.sqrt(fan2)),
        "bt": u(ks[3], (in_planes,), 1.0 / jnp.sqrt(fan2)),
        # BatchNorm2d(mid) -- deterministic eval-mode stats
        "g1": 1.0 + 0.1 * jax.random.normal(ks[4], (mid_planes,), jnp.float32),
        "be1": 0.05 * jax.random.normal(ks[5], (mid_planes,), jnp.float32),
        "m1": 0.1 * jax.random.normal(ks[6], (mid_planes,), jnp.float32),
        "v1": 1.0 + 0.1 * jax.random.uniform(ks[7], (mid_planes,), jnp.float32),
        # BatchNorm2d(in)
        "g2": 1.0 + 0.1 * jax.random.normal(ks[8], (in_planes,), jnp.float32),
        "be2": 0.05 * jax.random.normal(ks[9], (in_planes,), jnp.float32),
        "m2": 0.1 * jax.random.normal(ks[10], (in_planes,), jnp.float32),
        "v2": 1.0 + 0.1 * jax.random.uniform(ks[11], (in_planes,), jnp.float32),
        # alpha = ones(1) * 0.02
        "alpha": jnp.full((1,), 0.02, jnp.float32),
    }


# ------------------------------ pure-JAX reference ----------------------------

def ref_forward(x, params, kernel_size, eps=1e-5):
    k = kernel_size

    def bn(z, g, be, m, v):
        return (z - m[None, :, None, None]) / jnp.sqrt(v[None, :, None, None] + eps) \
            * g[None, :, None, None] + be[None, :, None, None]

    out = lax.conv_general_dilated(x, params["w1"], (1, 1), "VALID",
                                   dimension_numbers=("NCHW", "OIHW", "NCHW"))
    out = out + params["b1"][None, :, None, None]
    out = jnp.maximum(bn(out, params["g1"], params["be1"], params["m1"],
                         params["v1"]), 0.0)

    n, _, ho, wo = out.shape
    wt = params["wt"]
    cout = wt.shape[1]
    y = jnp.zeros((n, cout, ho + k - 1, wo + k - 1), jnp.float32)
    for p in range(k):          # explicit scatter form of ConvTranspose2d
        for q in range(k):
            y = y.at[:, :, p:p + ho, q:q + wo].add(
                jnp.einsum("ncij,co->noij", out, wt[:, :, p, q]))
    y = y + params["bt"][None, :, None, None]
    y = jnp.maximum(bn(y, params["g2"], params["be2"], params["m2"],
                       params["v2"]), 0.0)
    return y * params["alpha"]


# ----------------------------------- main -------------------------------------

if __name__ == "__main__":
    key = jax.random.PRNGKey(0)
    kp, kx = jax.random.split(key)
    in_planes, mid_planes, ksz = 4, 8, 3
    params = init_params(kp, in_planes, mid_planes, ksz)
    x = jax.random.normal(kx, (2, in_planes, 16, 16), jnp.float32)

    out = jax.block_until_ready(special_adapter_v1(x, params, kernel_size=ksz))
    ref = ref_forward(x, params, ksz)

    assert out.shape == x.shape, (out.shape, x.shape)
    err = float(jnp.max(jnp.abs(out - ref)))
    assert jnp.allclose(out, ref, atol=1e-3, rtol=1e-3), err
    print("KERNEL_OK")
</pallas_src>

<mosaic_0001>
module attributes {stable_mosaic.version = 11 : i64} {
  func.func @_adapter_kernel(%arg0: i32, %arg1: memref<1x8x324xf32, #tpu.memory_space<vmem>>, %arg2: memref<8x72xf32, #tpu.memory_space<vmem>>, %arg3: memref<8x1xf32, #tpu.memory_space<vmem>>, %arg4: memref<8x1xf32, #tpu.memory_space<vmem>>, %arg5: memref<4x72xf32, #tpu.memory_space<vmem>>, %arg6: memref<4x1xf32, #tpu.memory_space<vmem>>, %arg7: memref<4x1xf32, #tpu.memory_space<vmem>>, %arg8: memref<4x1xf32, #tpu.memory_space<vmem>>, %arg9: memref<1x4x256xf32, #tpu.memory_space<vmem>>) attributes {dimension_semantics = [#tpu.dimension_semantics<parallel>], iteration_bounds = array<i64: 2>, scalar_prefetch = 0 : i64, scratch_operands = 0 : i64, tpu.core_type = #tpu.core_type<tc>, window_params = [{transform_indices = @transform_0, window_bounds = array<i64: 1, 8, 324>}, {pipeline_mode = #tpu.pipeline_mode<synchronous>, transform_indices = @transform_1, window_bounds = array<i64: 8, 72>}, {pipeline_mode = #tpu.pipeline_mode<synchronous>, transform_indices = @transform_2, window_bounds = array<i64: 8, 1>}, {pipeline_mode = #tpu.pipeline_mode<synchronous>, transform_indices = @transform_3, window_bounds = array<i64: 8, 1>}, {pipeline_mode = #tpu.pipeline_mode<synchronous>, transform_indices = @transform_4, window_bounds = array<i64: 4, 72>}, {pipeline_mode = #tpu.pipeline_mode<synchronous>, transform_indices = @transform_5, window_bounds = array<i64: 4, 1>}, {pipeline_mode = #tpu.pipeline_mode<synchronous>, transform_indices = @transform_6, window_bounds = array<i64: 4, 1>}, {pipeline_mode = #tpu.pipeline_mode<synchronous>, transform_indices = @transform_7, window_bounds = array<i64: 4, 1>}, {transform_indices = @transform_8, window_bounds = array<i64: 1, 4, 256>}]} {
    %0 = tpu.iota {dimensions = array<i32: 1>} : vector<1x290xi32>
    %c34_i32 = arith.constant 34 : i32
    %1 = vector.broadcast %c34_i32 : i32 to vector<1x290xi32>
    %2 = arith.cmpi sge, %0, %1 : vector<1x290xi32>
    %c256_i32 = arith.constant 256 : i32
    %3 = vector.broadcast %c256_i32 : i32 to vector<1x290xi32>
    %4 = arith.cmpi slt, %0, %3 : vector<1x290xi32>
    %5 = arith.andi %2, %4 : vector<1x290xi1>
    %c34_i32_0 = arith.constant 34 : i32
    %6 = vector.broadcast %c34_i32_0 : i32 to vector<1x290xi32>
    %7 = arith.subi %0, %6 : vector<1x290xi32>
    %c16_i32 = arith.constant 16 : i32
    %c0_i32 = arith.constant 0 : i32
    %8 = arith.cmpi eq, %c16_i32, %c0_i32 : i32
    %c1_i32 = arith.constant 1 : i32
    %9 = arith.select %8, %c1_i32, %c16_i32 : i32
    %10 = vector.broadcast %9 : i32 to vector<1x290xi32>
    %11 = arith.remsi %7, %10 : vector<1x290xi32>
    %c0_i32_1 = arith.constant 0 : i32
    %12 = vector.broadcast %c0_i32_1 : i32 to vector<1x290xi32>
    %13 = arith.cmpi ne, %11, %12 : vector<1x290xi32>
    %c0_i32_2 = arith.constant 0 : i32
    %14 = vector.broadcast %c0_i32_2 : i32 to vector<1x290xi32>
    %15 = arith.cmpi slt, %11, %14 : vector<1x290xi32>
    %c0_i32_3 = arith.constant 0 : i32
    %16 = arith.cmpi slt, %9, %c0_i32_3 : i32
    %17 = vector.broadcast %16 : i1 to vector<1x290xi1>
    %18 = vector.broadcast %17 : vector<1x290xi1> to vector<1x290xi1>
    %19 = arith.xori %15, %18 : vector<1x290xi1>
    %20 = arith.andi %19, %13 : vector<1x290xi1>
    %21 = vector.broadcast %9 : i32 to vector<1x290xi32>
    %22 = arith.addi %11, %21 : vector<1x290xi32>
    %23 = arith.select %20, %22, %11 : vector<1x290xi1>, vector<1x290xi32>
    %c14_i32 = arith.constant 14 : i32
    %24 = vector.broadcast %c14_i32 : i32 to vector<1x290xi32>
    %25 = arith.cmpi slt, %23, %24 : vector<1x290xi32>
    %26 = arith.andi %5, %25 : vector<1x290xi1>
    %c0 = arith.constant 0 : index
    %c0_4 = arith.constant 0 : index
    %27 = vector.load %arg2[%c0, %c0_4] : memref<8x72xf32, #tpu.memory_space<vmem>>, vector<8x72xf32>
    %c0_5 = arith.constant 0 : index
    %c0_6 = arith.constant 0 : index
    %28 = vector.load %arg5[%c0_5, %c0_6] : memref<4x72xf32, #tpu.memory_space<vmem>>, vector<4x72xf32>
    %c0_7 = arith.constant 0 : index
    %c0_8 = arith.constant 0 : index
    %29 = vector.load %arg3[%c0_7, %c0_8] : memref<8x1xf32, #tpu.memory_space<vmem>>, vector<8x1xf32>
    %c0_9 = arith.constant 0 : index
    %c0_10 = arith.constant 0 : index
    %30 = vector.load %arg4[%c0_9, %c0_10] : memref<8x1xf32, #tpu.memory_space<vmem>>, vector<8x1xf32>
    %c0_11 = arith.constant 0 : index
    %c0_12 = arith.constant 0 : index
    %31 = vector.load %arg6[%c0_11, %c0_12] : memref<4x1xf32, #tpu.memory_space<vmem>>, vector<4x1xf32>
    %c0_13 = arith.constant 0 : index
    %c0_14 = arith.constant 0 : index
    %32 = vector.load %arg7[%c0_13, %c0_14] : memref<4x1xf32, #tpu.memory_space<vmem>>, vector<4x1xf32>
    %c0_15 = arith.constant 0 : index
    %c0_16 = arith.constant 0 : index
    %33 = vector.load %arg8[%c0_15, %c0_16] : memref<4x1xf32, #tpu.memory_space<vmem>>, vector<4x1xf32>
    %c0_17 = arith.constant 0 : index
    %c0_18 = arith.constant 0 : index
    %c0_19 = arith.constant 0 : index
    %34 = vector.load %arg1[%c0_17, %c0_18, %c0_19] : memref<1x8x324xf32, #tpu.memory_space<vmem>>, vector<1x8x324xf32>
    %35 = vector.shape_cast %34 : vector<1x8x324xf32> to vector<8x324xf32>
    %36 = vector.extract_strided_slice %35 {offsets = [0, 0], sizes = [8, 290], strides = [1, 1]} : vector<8x324xf32> to vector<8x290xf32>
    %37 = vector.extract_strided_slice %35 {offsets = [0, 1], sizes = [8, 290], strides = [1, 1]} : vector<8x324xf32> to vector<8x290xf32>
    %38 = vector.extract_strided_slice %35 {offsets = [0, 2], sizes = [8, 290], strides = [1, 1]} : vector<8x324xf32> to vector<8x290xf32>
    %39 = vector.extract_strided_slice %35 {offsets = [0, 16], sizes = [8, 290], strides = [1, 1]} : vector<8x324xf32> to vector<8x290xf32>
    %40 = vector.extract_strided_slice %35 {offsets = [0, 17], sizes = [8, 290], strides = [1, 1]} : vector<8x324xf32> to vector<8x290xf32>
    %41 = vector.extract_strided_slice %35 {offsets = [0, 18], sizes = [8, 290], strides = [1, 1]} : vector<8x324xf32> to vector<8x290xf32>
    %42 = vector.extract_strided_slice %35 {offsets = [0, 32], sizes = [8, 290], strides = [1, 1]} : vector<8x324xf32> to vector<8x290xf32>
    %43 = vector.extract_strided_slice %35 {offsets = [0, 33], sizes = [8, 290], strides = [1, 1]} : vector<8x324xf32> to vector<8x290xf32>
    %44 = vector.extract_strided_slice %35 {offsets = [0, 34], sizes = [8, 290], strides = [1, 1]} : vector<8x324xf32> to vector<8x290xf32>
    %45 = tpu.concatenate %36, %37, %38, %39, %40, %41, %42, %43, %44 in 0 : vector<8x290xf32>, vector<8x290xf32>, vector<8x290xf32>, vector<8x290xf32>, vector<8x290xf32>, vector<8x290xf32>, vector<8x290xf32>, vector<8x290xf32>, vector<8x290xf32> -> vector<72x290xf32>
    %cst = arith.constant dense<0.000000e+00> : vector<8x290xf32>
    %46 = tpu.matmul %27, %45, %cst {dimension_numbers = #tpu.dot_dimension_numbers<[1], [0], [0], [1], [0, 0, 1, 1], [], []>} : vector<8x72xf32>, vector<72x290xf32>, vector<8x290xf32> -> vector<8x290xf32>
    %47 = vector.broadcast %29 : vector<8x1xf32> to vector<8x290xf32>
    %48 = arith.mulf %46, %47 : vector<8x290xf32>
    %49 = vector.broadcast %30 : vector<8x1xf32> to vector<8x290xf32>
    %50 = arith.addf %48, %49 : vector<8x290xf32>
    %cst_20 = arith.constant 0.000000e+00 : f32
    %51 = vector.broadcast %cst_20 : f32 to vector<8x290xf32>
    %52 = arith.maximumf %50, %51 : vector<8x290xf32>
    %cst_21 = arith.constant 0.000000e+00 : f32
    %53 = vector.shape_cast %26 : vector<1x290xi1> to vector<1x290xi1>
    %54 = vector.broadcast %53 : vector<1x290xi1> to vector<8x290xi1>
    %55 = vector.broadcast %cst_21 : f32 to vector<8x290xf32>
    %56 = arith.select %54, %52, %55 : vector<8x290xi1>, vector<8x290xf32>
    %57 = vector.extract_strided_slice %56 {offsets = [0, 0], sizes = [8, 256], strides = [1, 1]} : vector<8x290xf32> to vector<8x256xf32>
    %58 = vector.extract_strided_slice %56 {offsets = [0, 1], sizes = [8, 256], strides = [1, 1]} : vector<8x290xf32> to vector<8x256xf32>
    %59 = vector.extract_strided_slice %56 {offsets = [0, 2], sizes = [8, 256], strides = [1, 1]} : vector<8x290xf32> to vector<8x256xf32>
    %60 = vector.extract_strided_slice %56 {offsets = [0, 16], sizes = [8, 256], strides = [1, 1]} : vector<8x290xf32> to vector<8x256xf32>
    %61 = vector.extract_strided_slice %56 {offsets = [0, 17], sizes = [8, 256], strides = [1, 1]} : vector<8x290xf32> to vector<8x256xf32>
    %62 = vector.extract_strided_slice %56 {offsets = [0, 18], sizes = [8, 256], strides = [1, 1]} : vector<8x290xf32> to vector<8x256xf32>
    %63 = vector.extract_strided_slice %56 {offsets = [0, 32], sizes = [8, 256], strides = [1, 1]} : vector<8x290xf32> to vector<8x256xf32>
    %64 = vector.extract_strided_slice %56 {offsets = [0, 33], sizes = [8, 256], strides = [1, 1]} : vector<8x290xf32> to vector<8x256xf32>
    %65 = vector.extract_strided_slice %56 {offsets = [0, 34], sizes = [8, 256], strides = [1, 1]} : vector<8x290xf32> to vector<8x256xf32>
    %66 = tpu.concatenate %57, %58, %59, %60, %61, %62, %63, %64, %65 in 0 : vector<8x256xf32>, vector<8x256xf32>, vector<8x256xf32>, vector<8x256xf32>, vector<8x256xf32>, vector<8x256xf32>, vector<8x256xf32>, vector<8x256xf32>, vector<8x256xf32> -> vector<72x256xf32>
    %cst_22 = arith.constant dense<0.000000e+00> : vector<4x256xf32>
    %67 = tpu.matmul %28, %66, %cst_22 {dimension_numbers = #tpu.dot_dimension_numbers<[1], [0], [0], [1], [0, 0, 1, 1], [], []>} : vector<4x72xf32>, vector<72x256xf32>, vector<4x256xf32> -> vector<4x256xf32>
    %68 = vector.broadcast %31 : vector<4x1xf32> to vector<4x256xf32>
    %69 = arith.mulf %67, %68 : vector<4x256xf32>
    %70 = vector.broadcast %32 : vector<4x1xf32> to vector<4x256xf32>
    %71 = arith.addf %69, %70 : vector<4x256xf32>
    %cst_23 = arith.constant 0.000000e+00 : f32
    %72 = vector.broadcast %cst_23 : f32 to vector<4x256xf32>
    %73 = arith.maximumf %71, %72 : vector<4x256xf32>
    %74 = vector.broadcast %33 : vector<4x1xf32> to vector<4x256xf32>
    %75 = arith.mulf %73, %74 : vector<4x256xf32>
    %c0_24 = arith.constant 0 : index
    %c0_25 = arith.constant 0 : index
    %c0_26 = arith.constant 0 : index
    %76 = vector.load %arg9[%c0_24, %c0_25, %c0_26] : memref<1x4x256xf32, #tpu.memory_space<vmem>>, vector<1x4x256xf32>
    %77 = vector.shape_cast %76 : vector<1x4x256xf32> to vector<4x256xf32>
    %78 = vector.shape_cast %75 : vector<4x256xf32> to vector<1x4x256xf32>
    tpu.vector_store %arg9[%c0_24, %c0_25, %c0_26], %78 {strides = array<i32>} : memref<1x4x256xf32, #tpu.memory_space<vmem>>, vector<1x4x256xf32>,
    return
  }
  func.func @transform_0(%arg0: i32) -> (i32, i32, i32) {
    %c0_i32 = arith.constant 0 : i32
    %c0_i32_0 = arith.constant 0 : i32
    %c0_i32_1 = arith.constant 0 : i32
    return %arg0, %c0_i32, %c0_i32_0 : i32, i32, i32
  }
  func.func @transform_1(%arg0: i32) -> (i32, i32) {
    %c0_i32 = arith.constant 0 : i32
    %c0_i32_0 = arith.constant 0 : i32
    %c0_i32_1 = arith.constant 0 : i32
    return %c0_i32, %c0_i32_0 : i32, i32
  }
  func.func @transform_2(%arg0: i32) -> (i32, i32) {
    %c0_i32 = arith.constant 0 : i32
    %c0_i32_0 = arith.constant 0 : i32
    %c0_i32_1 = arith.constant 0 : i32
    return %c0_i32, %c0_i32_0 : i32, i32
  }
  func.func @transform_3(%arg0: i32) -> (i32, i32) {
    %c0_i32 = arith.constant 0 : i32
    %c0_i32_0 = arith.constant 0 : i32
    %c0_i32_1 = arith.constant 0 : i32
    return %c0_i32, %c0_i32_0 : i32, i32
  }
  func.func @transform_4(%arg0: i32) -> (i32, i32) {
    %c0_i32 = arith.constant 0 : i32
    %c0_i32_0 = arith.constant 0 : i32
    %c0_i32_1 = arith.constant 0 : i32
    return %c0_i32, %c0_i32_0 : i32, i32
  }
  func.func @transform_5(%arg0: i32) -> (i32, i32) {
    %c0_i32 = arith.constant 0 : i32
    %c0_i32_0 = arith.constant 0 : i32
    %c0_i32_1 = arith.constant 0 : i32
    return %c0_i32, %c0_i32_0 : i32, i32
  }
  func.func @transform_6(%arg0: i32) -> (i32, i32) {
    %c0_i32 = arith.constant 0 : i32
    %c0_i32_0 = arith.constant 0 : i32
    %c0_i32_1 = arith.constant 0 : i32
    return %c0_i32, %c0_i32_0 : i32, i32
  }
  func.func @transform_7(%arg0: i32) -> (i32, i32) {
    %c0_i32 = arith.constant 0 : i32
    %c0_i32_0 = arith.constant 0 : i32
    %c0_i32_1 = arith.constant 0 : i32
    return %c0_i32, %c0_i32_0 : i32, i32
  }
  func.func @transform_8(%arg0: i32) -> (i32, i32, i32) {
    %c0_i32 = arith.constant 0 : i32
    %c0_i32_0 = arith.constant 0 : i32
    %c0_i32_1 = arith.constant 0 : i32
    return %arg0, %c0_i32, %c0_i32_0 : i32, i32, i32
  }
}

</mosaic_0001>

<llo_original>
// kernel: special_adapter_v1.1
$region0: #{special_adapter_v1.1}
  #allocation0 [shape = 'u32[]', space=smem, size = 0x4, offset = 0x4, fixed_abs, tag = 'smem constant byte address 0x4 - core index']
  #allocation1 [shape = 'u32[144,128]{1,0:T(1,128)}', space=vmem, size = 0x12000, scoped, tag = 'internal scratch']
  %s0 = inlined_call_operand.vmem [shape: f32[2,8,324], index: 0, kind: input, shape index: {}]
  %s1 = inlined_call_operand.vmem [shape: f32[8,72], index: 1, kind: input, shape index: {}]
  %s2 = inlined_call_operand.vmem [shape: f32[8,1], index: 2, kind: input, shape index: {}]
  %s3 = inlined_call_operand.vmem [shape: f32[8,1], index: 3, kind: input, shape index: {}]
  %s4 = inlined_call_operand.vmem [shape: f32[4,72], index: 4, kind: input, shape index: {}]
  %s5 = inlined_call_operand.vmem [shape: f32[4,1], index: 5, kind: input, shape index: {}]
  %s6 = inlined_call_operand.vmem [shape: f32[4,1], index: 6, kind: input, shape index: {}]
  %s7 = inlined_call_operand.vmem [shape: f32[4,1], index: 7, kind: input, shape index: {}]
  %s8 = inlined_call_operand.vmem [shape: f32[2,4,256], index: 8, kind: output, shape index: {}]
  %s9 = sld [smem:[#allocation0]]
  $region65: #{special_adapter_v1.1} parent=0
    _
  %s11 = ssub.s32 1, %s9
  %s12 = scalar_select 0, %s11, %s9
  loop: start=0, step=1, limit=4
  $region2: #{special_adapter_v1.1} parent=0 // loop_pre_header
    _
  $region3: #{special_adapter_v1.1} parent=0 // loop_header
    %s14 = sphi 0, %s18
    %p15 = scmp.ge.s32.totalorder %s14, 4
    %s24 = sphi 0, %s26
    %s27 = sphi 0, %s24
    %s28 = sphi 0, %s27
    %s44 = sphi 0, %s28
    %s48 = sphi 0, %s48
    %s50 = sphi 0, %s48
    %s51 = sphi 0, %s50
    %s65 = sphi 0, %s51
    %s69 = sphi 0, %s69
    %s71 = sphi 0, %s69
    %s72 = sphi 0, %s71
    %s86 = sphi 0, %s72
    %s90 = sphi 0, %s90
    %s92 = sphi 0, %s90
    %s93 = sphi 0, %s92
    %s107 = sphi 0, %s93
    %s111 = sphi 0, %s111
    %s113 = sphi 0, %s111
    %s114 = sphi 0, %s113
    %s128 = sphi 0, %s114
    %s132 = sphi 0, %s132
    %s134 = sphi 0, %s132
    %s135 = sphi 0, %s134
    %s149 = sphi 0, %s135
    %s153 = sphi 0, %s153
    %s155 = sphi 0, %s153
    %s156 = sphi 0, %s155
    %s170 = sphi 0, %s156
    %s174 = sphi 0, %s174
    %s176 = sphi 0, %s174
    %s177 = sphi 0, %s176
    %s191 = sphi 0, %s177
    %s197 = sphi 0, %s199
    %s200 = sphi 0, %s197
    %s201 = sphi 0, %s200
    %s217 = sphi 0, %s201
  $region4: #{special_adapter_v1.1} parent=0 // loop_header_branch
    %17 = sbr.rel (%p15) target = $region8
  $region5: #{special_adapter_v1.1} parent=0 // loop_body
    %s19 = ssub.s32 %s14, 1
    %s20 = ssub.s32 %s14, 2
    %s21 = sadd.s32 %s14, 1
    %s22 = ssub.s32 %s14, %s21
    %p23 = scmp.eq.s32.totalorder %s22, 0
    %s25 = sadd.s32 %s24, 1
    %s26 = scalar_select %p23, %s24, %s25
    %p29 = pneg %p23
    %p30 = scmp.eq.s32.totalorder %s14, 1
    %p31 = por %p29, %p30
    %p32 = scmp.ne.s32.totalorder %s24, %s27
    %p33 = scmp.eq.s32.totalorder %s14, 0
    %p34 = por %p32, %p33
    %p35 = scmp.ne.s32.totalorder %s24, %s27
    %p36 = scmp.eq.s32.totalorder %s19, 1
    %p37 = por %p35, %p36
    %p38 = scmp.ne.s32.totalorder %s27, %s28
    %p39 = scmp.eq.s32.totalorder %s19, 0
    %p40 = por %p38, %p39
    %p41 = scmp.ne.s32.totalorder %s27, %s28
    %p42 = scmp.eq.s32.totalorder %s20, 1
    %p43 = por %p41, %p42
    %p45 = scmp.ne.s32.totalorder %s28, %s44
    %p46 = scmp.eq.s32.totalorder %s20, 0
    %p47 = por %p45, %p46
    %s49 = sadd.s32 %s48, 1
    %p52 = scmp.eq.s32.totalorder %s14, 1
    %p53 = scmp.ne.s32.totalorder %s48, %s50
    %p54 = scmp.eq.s32.totalorder %s14, 0
    %p55 = por %p53, %p54
    %p56 = scmp.ne.s32.totalorder %s48, %s50
    %p57 = scmp.eq.s32.totalorder %s19, 1
    %p58 = por %p56, %p57
    %p59 = scmp.ne.s32.totalorder %s50, %s51
    %p60 = scmp.eq.s32.totalorder %s19, 0
    %p61 = por %p59, %p60
    %p62 = scmp.ne.s32.totalorder %s50, %s51
    %p63 = scmp.eq.s32.totalorder %s20, 1
    %p64 = por %p62, %p63
    %p66 = scmp.ne.s32.totalorder %s51, %s65
    %p67 = scmp.eq.s32.totalorder %s20, 0
    %p68 = por %p66, %p67
    %s70 = sadd.s32 %s69, 1
    %p73 = scmp.eq.s32.totalorder %s14, 1
    %p74 = scmp.ne.s32.totalorder %s69, %s71
    %p75 = scmp.eq.s32.totalorder %s14, 0
    %p76 = por %p74, %p75
    %p77 = scmp.ne.s32.totalorder %s69, %s71
    %p78 = scmp.eq.s32.totalorder %s19, 1
    %p79 = por %p77, %p78
    %p80 = scmp.ne.s32.totalorder %s71, %s72
    %p81 = scmp.eq.s32.totalorder %s19, 0
    %p82 = por %p80, %p81
    %p83 = scmp.ne.s32.totalorder %s71, %s72
    %p84 = scmp.eq.s32.totalorder %s20, 1
    %p85 = por %p83, %p84
    %p87 = scmp.ne.s32.totalorder %s72, %s86
    %p88 = scmp.eq.s32.totalorder %s20, 0
    %p89 = por %p87, %p88
    %s91 = sadd.s32 %s90, 1
    %p94 = scmp.eq.s32.totalorder %s14, 1
    %p95 = scmp.ne.s32.totalorder %s90, %s92
    %p96 = scmp.eq.s32.totalorder %s14, 0
    %p97 = por %p95, %p96
    %p98 = scmp.ne.s32.totalorder %s90, %s92
    %p99 = scmp.eq.s32.totalorder %s19, 1
    %p100 = por %p98, %p99
    %p101 = scmp.ne.s32.totalorder %s92, %s93
    %p102 = scmp.eq.s32.totalorder %s19, 0
    %p103 = por %p101, %p102
    %p104 = scmp.ne.s32.totalorder %s92, %s93
    %p105 = scmp.eq.s32.totalorder %s20, 1
    %p106 = por %p104, %p105
    %p108 = scmp.ne.s32.totalorder %s93, %s107
    %p109 = scmp.eq.s32.totalorder %s20, 0
    %p110 = por %p108, %p109
    %s112 = sadd.s32 %s111, 1
    %p115 = scmp.eq.s32.totalorder %s14, 1
    %p116 = scmp.ne.s32.totalorder %s111, %s113
    %p117 = scmp.eq.s32.totalorder %s14, 0
    %p118 = por %p116, %p117
    %p119 = scmp.ne.s32.totalorder %s111, %s113
    %p120 = scmp.eq.s32.totalorder %s19, 1
    %p121 = por %p119, %p120
    %p122 = scmp.ne.s32.totalorder %s113, %s114
    %p123 = scmp.eq.s32.totalorder %s19, 0
    %p124 = por %p122, %p123
    %p125 = scmp.ne.s32.totalorder %s113, %s114
    %p126 = scmp.eq.s32.totalorder %s20, 1
    %p127 = por %p125, %p126
    %p129 = scmp.ne.s32.totalorder %s114, %s128
    %p130 = scmp.eq.s32.totalorder %s20, 0
    %p131 = por %p129, %p130
    %s133 = sadd.s32 %s132, 1
    %p136 = scmp.eq.s32.totalorder %s14, 1
    %p137 = scmp.ne.s32.totalorder %s132, %s134
    %p138 = scmp.eq.s32.totalorder %s14, 0
    %p139 = por %p137, %p138
    %p140 = scmp.ne.s32.totalorder %s132, %s134
    %p141 = scmp.eq.s32.totalorder %s19, 1
    %p142 = por %p140, %p141
    %p143 = scmp.ne.s32.totalorder %s134, %s135
    %p144 = scmp.eq.s32.totalorder %s19, 0
    %p145 = por %p143, %p144
    %p146 = scmp.ne.s32.totalorder %s134, %s135
    %p147 = scmp.eq.s32.totalorder %s20, 1
    %p148 = por %p146, %p147
    %p150 = scmp.ne.s32.totalorder %s135, %s149
    %p151 = scmp.eq.s32.totalorder %s20, 0
    %p152 = por %p150, %p151
    %s154 = sadd.s32 %s153, 1
    %p157 = scmp.eq.s32.totalorder %s14, 1
    %p158 = scmp.ne.s32.totalorder %s153, %s155
    %p159 = scmp.eq.s32.totalorder %s14, 0
    %p160 = por %p158, %p159
    %p161 = scmp.ne.s32.totalorder %s153, %s155
    %p162 = scmp.eq.s32.totalorder %s19, 1
    %p163 = por %p161, %p162
    %p164 = scmp.ne.s32.totalorder %s155, %s156
    %p165 = scmp.eq.s32.totalorder %s19, 0
    %p166 = por %p164, %p165
    %p167 = scmp.ne.s32.totalorder %s155, %s156
    %p168 = scmp.eq.s32.totalorder %s20, 1
    %p169 = por %p167, %p168
    %p171 = scmp.ne.s32.totalorder %s156, %s170
    %p172 = scmp.eq.s32.totalorder %s20, 0
    %p173 = por %p171, %p172
    %s175 = sadd.s32 %s174, 1
    %p178 = scmp.eq.s32.totalorder %s14, 1
    %p179 = scmp.ne.s32.totalorder %s174, %s176
    %p180 = scmp.eq.s32.totalorder %s14, 0
    %p181 = por %p179, %p180
    %p182 = scmp.ne.s32.totalorder %s174, %s176
    %p183 = scmp.eq.s32.totalorder %s19, 1
    %p184 = por %p182, %p183
    %p185 = scmp.ne.s32.totalorder %s176, %s177
    %p186 = scmp.eq.s32.totalorder %s19, 0
    %p187 = por %p185, %p186
    %p188 = scmp.ne.s32.totalorder %s176, %s177
    %p189 = scmp.eq.s32.totalorder %s20, 1
    %p190 = por %p188, %p189
    %p192 = scmp.ne.s32.totalorder %s177, %s191
    %p193 = scmp.eq.s32.totalorder %s20, 0
    %p194 = por %p192, %p193
    %s195 = ssub.s32 %s14, %s21
    %p196 = scmp.eq.s32.totalorder %s195, 0
    %s198 = sadd.s32 %s197, 1
    %s199 = scalar_select %p196, %s197, %s198
    %p202 = pneg %p196
    %p203 = scmp.eq.s32.totalorder %s14, 1
    %p204 = por %p202, %p203
    %p205 = scmp.ne.s32.totalorder %s197, %s200
    %p206 = scmp.eq.s32.totalorder %s14, 0
    %p207 = por %p205, %p206
    %p208 = scmp.ne.s32.totalorder %s197, %s200
    %p209 = scmp.eq.s32.totalorder %s19, 1
    %p210 = por %p208, %p209
    %p211 = scmp.ne.s32.totalorder %s200, %s201
    %p212 = scmp.eq.s32.totalorder %s19, 0
    %p213 = por %p211, %p212
    %p214 = scmp.ne.s32.totalorder %s200, %s201
    %p215 = scmp.eq.s32.totalorder %s20, 1
    %p216 = por %p214, %p215
    %p218 = scmp.ne.s32.totalorder %s201, %s217
    %p219 = scmp.eq.s32.totalorder %s20, 0
    %p220 = por %p218, %p219
    %p221 = scmp.le.s32.totalorder 1, %s14
    %p222 = scmp.lt.s32.totalorder %s14, 3
    %p223 = pnand %p221, %p222
    %p224 = pneg %p223
    // Predicated region
    $region9: #{special_adapter_v1.1} parent=5 // pred_check
      _
    $region10: #{special_adapter_v1.1} parent=5 // pred_check_branch
      %226 = sbr.rel (%p223) target = $region12
    $region11: #{special_adapter_v1.1} parent=5 // pred_region
      %s227 = ssub.s32 %s14, 1
      // Predicated region
      $region13: #{special_adapter_v1.1} parent=11 // pred_check
        %p228 = pneg %p61
      $region14: #{special_adapter_v1.1} parent=11 // pred_check_branch
        %230 = sbr.rel (%p228) target = $region16
      $region15: #{special_adapter_v1.1} parent=11 // pred_region
        _
      $region16: #{special_adapter_v1.1} parent=11 // pred_fallthru
        _
      // Predicated region
      $region17: #{special_adapter_v1.1} parent=11 // pred_check
        %p231 = pneg %p82
      $region18: #{special_adapter_v1.1} parent=11 // pred_check_branch
        %233 = sbr.rel (%p231) target = $region20
      $region19: #{special_adapter_v1.1} parent=11 // pred_region
        _
      $region20: #{special_adapter_v1.1} parent=11 // pred_fallthru
        _
      // Predicated region
      $region21: #{special_adapter_v1.1} parent=11 // pred_check
        %p234 = pneg %p103
      $region22: #{special_adapter_v1.1} parent=11 // pred_check_branch
        %236 = sbr.rel (%p234) target = $region24
      $region23: #{special_adapter_v1.1} parent=11 // pred_region
        _
      $region24: #{special_adapter_v1.1} parent=11 // pred_fallthru
        _
      // Predicated region
      $region25: #{special_adapter_v1.1} parent=11 // pred_check
        %p237 = pneg %p124
      $region26: #{special_adapter_v1.1} parent=11 // pred_check_branch
        %239 = sbr.rel (%p237) target = $region28
      $region27: #{special_adapter_v1.1} parent=11 // pred_region
        _
      $region28: #{special_adapter_v1.1} parent=11 // pred_fallthru
        _
      // Predicated region
      $region29: #{special_adapter_v1.1} parent=11 // pred_check
        %p240 = pneg %p145
      $region30: #{special_adapter_v1.1} parent=11 // pred_check_branch
        %242 = sbr.rel (%p240) target = $region32
      $region31: #{special_adapter_v1.1} parent=11 // pred_region
        _
      $region32: #{special_adapter_v1.1} parent=11 // pred_fallthru
        _
      // Predicated region
      $region33: #{special_adapter_v1.1} parent=11 // pred_check
        %p243 = pneg %p166
      $region34: #{special_adapter_v1.1} parent=11 // pred_check_branch
        %245 = sbr.rel (%p243) target = $region36
      $region35: #{special_adapter_v1.1} parent=11 // pred_region
        _
      $region36: #{special_adapter_v1.1} parent=11 // pred_fallthru
        _
      // Predicated region
      $region37: #{special_adapter_v1.1} parent=11 // pred_check
        %p246 = pneg %p187
      $region38: #{special_adapter_v1.1} parent=11 // pred_check_branch
        %248 = sbr.rel (%p246) target = $region40
      $region39: #{special_adapter_v1.1} parent=11 // pred_region
        _
      $region40: #{special_adapter_v1.1} parent=11 // pred_fallthru
        _
    $region12: #{special_adapter_v1.1} parent=5 // pred_fallthru
      _
    %p249 = scmp.lt.s32.totalorder %s14, 2
    // Predicated region
    $region41: #{special_adapter_v1.1} parent=5 // pred_check
      %p250 = pneg %p249
    $region42: #{special_adapter_v1.1} parent=5 // pred_check_branch
      %252 = sbr.rel (%p250) target = $region44
    $region43: #{special_adapter_v1.1} parent=5 // pred_region
      // Predicated region
      $region45: #{special_adapter_v1.1} parent=43 // pred_check
        %p253 = pneg %p34
      $region46: #{special_adapter_v1.1} parent=43 // pred_check_branch
        %255 = sbr.rel (%p253) target = $region48
      $region47: #{special_adapter_v1.1} parent=43 // pred_region
        %p256 = scmp.lt.s32.totalorder %s14, 1
        %s257 = scalar_select %p256, %s14, 1
        %s258 = smul.addr %s257, 3
        %s259 = smul.addr %s258, 8
        %s260 = scalar_lea.vmem %s0, %s259
      $region48: #{special_adapter_v1.1} parent=43 // pred_fallthru
        _
    $region44: #{special_adapter_v1.1} parent=5 // pred_fallthru
      _
    %p261 = scmp.le.s32.totalorder 1, %s14
    %p262 = scmp.lt.s32.totalorder %s14, 3
    %p263 = pnand %p261, %p262
    %p264 = pneg %p263
    // Predicated region
    $region49: #{special_adapter_v1.1} parent=5 // pred_check
      _
    $region50: #{special_adapter_v1.1} parent=5 // pred_check_branch
      %266 = sbr.rel (%p263) target = $region52
    $region51: #{special_adapter_v1.1} parent=5 // pred_region
      %s267 = ssub.s32 %s14, 1
      %p268 = scmp.lt.s32.totalorder %s19, 1
      %s269 = scalar_select %p268, %s19, 1
      %s270 = smul.addr %s269, 3
      %s271 = smul.addr %s270, 8
      %s272 = scalar_lea.vmem %s0, %s271
      %p273 = pneg %p40
      %p274 = pneg %p37
      %p275 = pneg %p61
      %p276 = pneg %p58
      %p277 = pneg %p82
      %p278 = pneg %p79
      %p279 = pneg %p103
      %p280 = pneg %p100
      %p281 = pneg %p124
      %p282 = pneg %p121
      %p283 = pneg %p145
      %p284 = pneg %p142
      %p285 = pneg %p166
      %p286 = pneg %p163
      %p287 = pneg %p187
      %p288 = pneg %p184
      %p289 = pneg %p213
      %p290 = pneg %p210
      %p291 = scmp.lt.s32.totalorder %s19, 1
      %s292 = scalar_select %p291, %s19, 1
      %s293 = smul.addr %s292, 2
      %s294 = smul.addr %s293, 4
      %s295 = scalar_lea.vmem %s8, %s294
      %p296 = scmp.lt.s32.totalorder %s19, 1
      %s297 = scalar_select %p296, %s19, 1
      %s298 = smul.addr %s297, 3
      %s299 = smul.addr %s298, 8
      %s300 = scalar_lea.vmem %s0, %s299
      %p301 = scmp.lt.s32.totalorder %s19, 1
      %s302 = scalar_select %p301, %s19, 1
      %s303 = smul.addr %s302, 2
      %s304 = smul.addr %s303, 4
      %s305 = scalar_lea.vmem %s8, %s304
      %v306 = vlaneseq
      %v307 = vand.u32 %v306, 127
      %v308 = vadd.s32 %v307, 128
      %v309 = vadd.s32 %v307, 256
      %vm310 = vcmp.ge.s32.totalorder %v307, 34
      %vm311 = vcmp.ge.s32.totalorder %v308, 34
      %vm312 = vcmp.ge.s32.totalorder %v309, 34
      %vm313 = vcmp.lt.s32.totalorder %v307, 256
      %vm314 = vcmp.lt.s32.totalorder %v308, 256
      %vm315 = vcmp.lt.s32.totalorder %v309, 256
      %vm316 = vmand %vm310, %vm313
      %vm317 = vmand %vm311, %vm314
      %vm318 = vmand %vm312, %vm315
      %v319 = vsub.s32 %v307, 34
      %v320 = vsub.s32 %v308, 34
      %v321 = vsub.s32 %v309, 34
      %vm322 = vcmp.lt.s32.totalorder %v319, 0
      %v323 = vsub.s32 0, %v319
      %v324 = vsel %vm322, %v323, %v319
      %v325 = vshrl.u32 %v324, 4
      %v326 = vand.u32 %v324, 15
      %v327 = vsub.s32 0, %v326
      %v328 = vsel %vm322, %v327, %v326
      %vm329 = vcmp.lt.s32.totalorder %v320, 0
      %v330 = vsub.s32 0, %v320
      %v331 = vsel %vm329, %v330, %v320
      %v332 = vshrl.u32 %v331, 4
      %v333 = vand.u32 %v331, 15
      %v334 = vsub.s32 0, %v333
      %v335 = vsel %vm329, %v334, %v333
      %vm336 = vcmp.lt.s32.totalorder %v321, 0
      %v337 = vsub.s32 0, %v321
      %v338 = vsel %vm336, %v337, %v321
      %v339 = vshrl.u32 %v338, 4
      %v340 = vand.u32 %v338, 15
      %v341 = vsub.s32 0, %v340
      %v342 = vsel %vm336, %v341, %v340
      %vm343 = vcmp.ne.s32.totalorder %v328, 0
      %vm344 = vcmp.ne.s32.totalorder %v335, 0
      %vm345 = vcmp.ne.s32.totalorder %v342, 0
      %vm346 = vcmp.lt.s32.totalorder %v328, 0
      %vm347 = vcmp.lt.s32.totalorder %v335, 0
      %vm348 = vcmp.lt.s32.totalorder %v342, 0
      %vm349 = vmand %vm346, %vm343
      %vm350 = vmand %vm347, %vm344
      %vm351 = vmand %vm348, %vm345
      %v352 = vadd.s32 %v328, 16
      %v353 = vadd.s32 %v335, 16
      %v354 = vadd.s32 %v342, 16
      %v355 = vsel %vm349, %v352, %v328
      %v356 = vsel %vm350, %v353, %v335
      %v357 = vsel %vm351, %v354, %v342
      %vm358 = vcmp.lt.s32.totalorder %v355, 14
      %vm359 = vcmp.lt.s32.totalorder %v356, 14
      %vm360 = vcmp.lt.s32.totalorder %v357, 14
      %vm361 = vmand %vm316, %vm358
      %vm362 = vmand %vm317, %vm359
      %vm363 = vmand %vm318, %vm360
      %v364 = vld [vmem:[%s1] sm:$0xff]
      %v365 = vld [vmem:[%s4] sm:$0xf]
      %v366 = vld [vmem:[%s2] sm:$0xff]
      %v367 = vld [vmem:[%s3] sm:$0xff]
      %v368 = vld [vmem:[%s5] sm:$0xf]
      %v369 = vld [vmem:[%s6] sm:$0xf]
      %v370 = vld [vmem:[%s7] sm:$0xf]
      %v371 = vld [vmem:[%s300] sm:$0xff]
      %v372 = vld [vmem:[%s300 + $0x8] sm:$0xff]
      %v373 = vld [vmem:[%s300 + $0x10] sm:$0xff]
      %377 = vrot.lane.b32.xlu0 %v371, 127
      %v378 = vpop.permute.xlu0 %377
      %379 = vrot.lane.b32.xlu0 %v372, 127
      %v380 = vpop.permute.xlu0 %379
      %381 = vrot.lane.b32.xlu0 %v373, 127
      %v382 = vpop.permute.xlu0 %381
      %vm383 = vcmask 1039360
      %v384 = vsel %vm383, %v378, %v380
      %v385 = vsel %vm383, %v380, %v382
      %389 = vrot.lane.b32.xlu0 %v371, 126
      %v390 = vpop.permute.xlu0 %389
      %391 = vrot.lane.b32.xlu0 %v372, 126
      %v392 = vpop.permute.xlu0 %391
      %393 = vrot.lane.b32.xlu0 %v373, 126
      %v394 = vpop.permute.xlu0 %393
      %vm395 = vcmask 1031168
      %v396 = vsel %vm395, %v390, %v392
      %v397 = vsel %vm395, %v392, %v394
      %401 = vrot.lane.b32.xlu0 %v371, 112
      %v402 = vpop.permute.xlu0 %401
      %403 = vrot.lane.b32.xlu0 %v372, 112
      %v404 = vpop.permute.xlu0 %403
      %405 = vrot.lane.b32.xlu0 %v373, 112
      %v406 = vpop.permute.xlu0 %405
      %vm407 = vcmask 916480
      %v408 = vsel %vm407, %v402, %v404
      %v409 = vsel %vm407, %v404, %v406
      %413 = vrot.lane.b32.xlu0 %v371, 111
      %v414 = vpop.permute.xlu0 %413
      %415 = vrot.lane.b32.xlu0 %v372, 111
      %v416 = vpop.permute.xlu0 %415
      %417 = vrot.lane.b32.xlu0 %v373, 111
      %v418 = vpop.permute.xlu0 %417
      %vm419 = vcmask 908288
      %v420 = vsel %vm419, %v414, %v416
      %v421 = vsel %vm419, %v416, %v418
      %425 = vrot.lane.b32.xlu0 %v371, 110
      %v426 = vpop.permute.xlu0 %425
      %427 = vrot.lane.b32.xlu0 %v372, 110
      %v428 = vpop.permute.xlu0 %427
      %429 = vrot.lane.b32.xlu0 %v373, 110
      %v430 = vpop.permute.xlu0 %429
      %vm431 = vcmask 900096
      %v432 = vsel %vm431, %v426, %v428
      %v433 = vsel %vm431, %v428, %v430
      %437 = vrot.lane.b32.xlu0 %v371, 96
      %v438 = vpop.permute.xlu0 %437
      %439 = vrot.lane.b32.xlu0 %v372, 96
      %v440 = vpop.permute.xlu0 %439
      %441 = vrot.lane.b32.xlu0 %v373, 96
      %v442 = vpop.permute.xlu0 %441
      %vm443 = vcmask 785408
      %v444 = vsel %vm443, %v438, %v440
      %v445 = vsel %vm443, %v440, %v442
      %449 = vrot.lane.b32.xlu0 %v371, 95
      %v450 = vpop.permute.xlu0 %449
      %451 = vrot.lane.b32.xlu0 %v372, 95
      %v452 = vpop.permute.xlu0 %451
      %453 = vrot.lane.b32.xlu0 %v373, 95
      %v454 = vpop.permute.xlu0 %453
      %vm455 = vcmask 777216
      %v456 = vsel %vm455, %v450, %v452
      %v457 = vsel %vm455, %v452, %v454
      %461 = vrot.lane.b32.xlu0 %v371, 94
      %v462 = vpop.permute.xlu0 %461
      %463 = vrot.lane.b32.xlu0 %v372, 94
      %v464 = vpop.permute.xlu0 %463
      %465 = vrot.lane.b32.xlu0 %v373, 94
      %v466 = vpop.permute.xlu0 %465
      %vm467 = vcmask 769024
      %v468 = vsel %vm467, %v462, %v464
      %v469 = vsel %vm467, %v464, %v466
      %vm473 = vcmask 588800
      %v475 = vsel %vm473, %v364, 0
      %477 = vmatprep.subr.mxu0 %v372
      %478 = vmatpush1.msra.mxu0 %v371
      %479 = vmatprep.subr.mxu0 %v385
      %480 = vmatpush1.msra.mxu0 %v384
      %481 = vmatprep.subr.mxu0 %v397
      %482 = vmatpush1.msra.mxu0 %v396
      %483 = vmatprep.subr.mxu0 %v409
      %484 = vmatpush1.msra.mxu0 %v408
      %485 = vmatprep.subr.mxu0 %v421
      %486 = vmatpush1.msra.mxu0 %v420
      %487 = vmatprep.subr.mxu0 %v433
      %488 = vmatpush1.msra.mxu0 %v432
      %489 = vmatprep.subr.mxu0 %v445
      %490 = vmatpush1.msra.mxu0 %v444
      %491 = vmatprep.subr.mxu0 %v457
      %492 = vmatpush1.msra.mxu0 %v456
      %493 = vmatprep.subr.mxu0 %v469
      %494 = vmatpush1.msra.mxu0 %v468
      %495 = vmatprep.subr.mxu0 0.0
      %496 = vmatpush1.msra.mxu0 0.0
      %497 = vmatprep.subr.mxu0 0.0
      %498 = vmatpush1.msra.mxu0 0.0
      %499 = vmatprep.subr.mxu0 0.0
      %500 = vmatpush1.msra.mxu0 0.0
      %501 = vmatprep.subr.mxu0 0.0
      %502 = vmatpush1.msra.mxu0 0.0
      %503 = vmatprep.subr.mxu0 0.0
      %504 = vmatpush1.msra.mxu0 0.0
      %505 = vmatprep.subr.mxu0 0.0
      %506 = vmatpush1.msra.mxu0 0.0
      %507 = vmatprep.subr.mxu0 0.0
      %508 = vmatpush1.msra.mxu0 0.0
      %509 = vmatprep.subr.mxu0 0.0
      %510 = vmatpush1.msra.mxu0 0.0
      %511 = vmatprep.subr.mxu0 0.0
      %512 = vmatpush1.msra.mxu0 0.0
      %513 = vmatprep.subr.mxu0 0.0
      %514 = vmatpush1.msra.mxu0 0.0
      %515 = vmatprep.subr.mxu0 0.0
      %516 = vmatpush1.msra.mxu0 0.0
      %517 = vmatprep.subr.mxu0 0.0
      %518 = vmatpush1.msra.mxu0 0.0
      %519 = vmatprep.subr.mxu0 0.0
      %520 = vmatpush1.msra.mxu0 0.0
      %521 = vmatprep.subr.mxu0 0.0
      %522 = vmatpush1.msra.mxu0 0.0
      %523 = vmatprep.subr.mxu0 0.0
      %524 = vmatpush1.msra.mxu0 0.0
      %525 = vmatprep.subr.mxu0 0.0
      %526 = vmatpush1.msra.mxu0 0.0
      %527 = vmatprep.subr.mxu0 0.0
      %528 = vmatpush1.msra.mxu0 0.0
      %529 = vmatprep.subr.mxu0 0.0
      %530 = vmatpush1.msra.mxu0 0.0
      %531 = vmatprep.subr.mxu0 0.0
      %532 = vmatpush1.msra.mxu0 0.0
      %533 = vmatprep.subr.mxu0 0.0
      %534 = vmatpush1.msra.mxu0 0.0
      %535 = vmatprep.subr.mxu0 0.0
      %536 = vmatpush1.msra.mxu0 0.0
      %537 = vmatprep.subr.mxu0 0.0
      %538 = vmatpush1.msra.mxu0 0.0
      %539 = vmatprep.subr.mxu0 0.0
      %540 = vmatpush1.msra.mxu0 0.0
      %541 = vmatprep.mubr.f32.mxu0 0.0
      %542 = vmatmul.mubr.f32.gmra.mrb[0].mxu0 %v475
      %v543 = vpop.f32.mrb[0].mxu0
      %v544 = vadd.f32 0.0, %v543
      %v545 = vpop.f32.mrb[0].mxu0
      %v546 = vadd.f32 0.0, %v545
      %547 = vdwg.mxu0
      %548 = vmatprep.subr.mxu0 0.0
      %549 = vmatpush1.msra.mxu0 %v373
      %550 = vmatprep.subr.mxu0 0.0
      %551 = vmatpush1.msra.mxu0 %v382
      %552 = vmatprep.subr.mxu0 0.0
      %553 = vmatpush1.msra.mxu0 %v394
      %554 = vmatprep.subr.mxu0 0.0
      %555 = vmatpush1.msra.mxu0 %v406
      %556 = vmatprep.subr.mxu0 0.0
      %557 = vmatpush1.msra.mxu0 %v418
      %558 = vmatprep.subr.mxu0 0.0
      %559 = vmatpush1.msra.mxu0 %v430
      %560 = vmatprep.subr.mxu0 0.0
      %561 = vmatpush1.msra.mxu0 %v442
      %562 = vmatprep.subr.mxu0 0.0
      %563 = vmatpush1.msra.mxu0 %v454
      %564 = vmatprep.subr.mxu0 0.0
      %565 = vmatpush1.msra.mxu0 %v466
      %566 = vmatprep.subr.mxu0 0.0
      %567 = vmatpush1.msra.mxu0 0.0
      %568 = vmatprep.subr.mxu0 0.0
      %569 = vmatpush1.msra.mxu0 0.0
      %570 = vmatprep.subr.mxu0 0.0
      %571 = vmatpush1.msra.mxu0 0.0
      %572 = vmatprep.subr.mxu0 0.0
      %573 = vmatpush1.msra.mxu0 0.0
      %574 = vmatprep.subr.mxu0 0.0
      %575 = vmatpush1.msra.mxu0 0.0
      %576 = vmatprep.subr.mxu0 0.0
      %577 = vmatpush1.msra.mxu0 0.0
      %578 = vmatprep.subr.mxu0 0.0
      %579 = vmatpush1.msra.mxu0 0.0
      %580 = vmatprep.subr.mxu0 0.0
      %581 = vmatpush1.msra.mxu0 0.0
      %582 = vmatprep.subr.mxu0 0.0
      %583 = vmatpush1.msra.mxu0 0.0
      %584 = vmatprep.subr.mxu0 0.0
      %585 = vmatpush1.msra.mxu0 0.0
      %586 = vmatprep.subr.mxu0 0.0
      %587 = vmatpush1.msra.mxu0 0.0
      %588 = vmatprep.subr.mxu0 0.0
      %589 = vmatpush1.msra.mxu0 0.0
      %590 = vmatprep.subr.mxu0 0.0
      %591 = vmatpush1.msra.mxu0 0.0
      %592 = vmatprep.subr.mxu0 0.0
      %593 = vmatpush1.msra.mxu0 0.0
      %594 = vmatprep.subr.mxu0 0.0
      %595 = vmatpush1.msra.mxu0 0.0
      %596 = vmatprep.subr.mxu0 0.0
      %597 = vmatpush1.msra.mxu0 0.0
      %598 = vmatprep.subr.mxu0 0.0
      %599 = vmatpush1.msra.mxu0 0.0
      %600 = vmatprep.subr.mxu0 0.0
      %601 = vmatpush1.msra.mxu0 0.0
      %602 = vmatprep.subr.mxu0 0.0
      %603 = vmatpush1.msra.mxu0 0.0
      %604 = vmatprep.subr.mxu0 0.0
      %605 = vmatpush1.msra.mxu0 0.0
      %606 = vmatprep.subr.mxu0 0.0
      %607 = vmatpush1.msra.mxu0 0.0
      %608 = vmatprep.subr.mxu0 0.0
      %609 = vmatpush1.msra.mxu0 0.0
      %610 = vmatprep.subr.mxu0 0.0
      %611 = vmatpush1.msra.mxu0 0.0
      %612 = vmatprep.mubr.f32.mxu0 0.0
      %613 = vmatmul.mubr.f32.gmra.mrb[0].mxu0 %v475
      %v614 = vpop.f32.mrb[0].mxu0
      %v615 = vadd.f32 0.0, %v614
      %v616 = vpop.f32.mrb[0].mxu0
      %617 = vdwg.mxu0
      %619 = vset.pattern.permute.xlu0 0
      %620 = vperm.xlu0 %619, %v366
      %v621 = vpop.permute.xlu0 %620
      %v623 = vmul.f32 %v544, %v621
      %v624 = vmul.f32 %v546, %v621
      %v625 = vmul.f32 %v615, %v621
      %627 = vset.pattern.permute.xlu0 0
      %628 = vperm.xlu0 %627, %v367
      %v629 = vpop.permute.xlu0 %628
      %v631 = vadd.f32 %v623, %v629
      %v632 = vadd.f32 %v624, %v629
      %v633 = vadd.f32 %v625, %v629
      %v634 = vmax.f32 %v631, 0.0
      %v635 = vmax.f32 %v632, 0.0
      %v636 = vmax.f32 %v633, 0.0
      %v637 = vsel %vm361, 1, 0
      %v638 = vsel %vm362, 1, 0
      %v639 = vsel %vm363, 1, 0
      %vm640 = vcmp.eq.s32.totalorder %v637, 1
      %vm641 = vcmp.eq.s32.totalorder %v638, 1
      %vm642 = vcmp.eq.s32.totalorder %v639, 1
      %v643 = vsel %vm640, %v634, 0.0
      %v644 = vsel %vm641, %v635, 0.0
      %v645 = vsel %vm642, %v636, 0.0
      %649 = vrot.lane.b32.xlu0 %v643, 127
      %v650 = vpop.permute.xlu0 %649
      %651 = vrot.lane.b32.xlu0 %v644, 127
      %v652 = vpop.permute.xlu0 %651
      %653 = vrot.lane.b32.xlu0 %v645, 127
      %v654 = vpop.permute.xlu0 %653
      %v655 = vsel %vm383, %v650, %v652
      %v656 = vsel %vm383, %v652, %v654
      %659 = vrot.lane.b32.xlu0 %v643, 126
      %v660 = vpop.permute.xlu0 %659
      %661 = vrot.lane.b32.xlu0 %v644, 126
      %v662 = vpop.permute.xlu0 %661
      %663 = vrot.lane.b32.xlu0 %v645, 126
      %v664 = vpop.permute.xlu0 %663
      %v665 = vsel %vm395, %v660, %v662
      %v666 = vsel %vm395, %v662, %v664
      %669 = vrot.lane.b32.xlu0 %v643, 112
      %v670 = vpop.permute.xlu0 %669
      %671 = vrot.lane.b32.xlu0 %v644, 112
      %v672 = vpop.permute.xlu0 %671
      %673 = vrot.lane.b32.xlu0 %v645, 112
      %v674 = vpop.permute.xlu0 %673
      %v675 = vsel %vm407, %v670, %v672
      %v676 = vsel %vm407, %v672, %v674
      %679 = vrot.lane.b32.xlu0 %v643, 111
      %v680 = vpop.permute.xlu0 %679
      %681 = vrot.lane.b32.xlu0 %v644, 111
      %v682 = vpop.permute.xlu0 %681
      %683 = vrot.lane.b32.xlu0 %v645, 111
      %v684 = vpop.permute.xlu0 %683
      %v685 = vsel %vm419, %v680, %v682
      %v686 = vsel %vm419, %v682, %v684
      %689 = vrot.lane.b32.xlu0 %v643, 110
      %v690 = vpop.permute.xlu0 %689
      %691 = vrot.lane.b32.xlu0 %v644, 110
      %v692 = vpop.permute.xlu0 %691
      %693 = vrot.lane.b32.xlu0 %v645, 110
      %v694 = vpop.permute.xlu0 %693
      %v695 = vsel %vm431, %v690, %v692
      %v696 = vsel %vm431, %v692, %v694
      %699 = vrot.lane.b32.xlu0 %v643, 96
      %v700 = vpop.permute.xlu0 %699
      %701 = vrot.lane.b32.xlu0 %v644, 96
      %v702 = vpop.permute.xlu0 %701
      %703 = vrot.lane.b32.xlu0 %v645, 96
      %v704 = vpop.permute.xlu0 %703
      %v705 = vsel %vm443, %v700, %v702
      %v706 = vsel %vm443, %v702, %v704
      %709 = vrot.lane.b32.xlu0 %v643, 95
      %v710 = vpop.permute.xlu0 %709
      %711 = vrot.lane.b32.xlu0 %v644, 95
      %v712 = vpop.permute.xlu0 %711
      %713 = vrot.lane.b32.xlu0 %v645, 95
      %v714 = vpop.permute.xlu0 %713
      %v715 = vsel %vm455, %v710, %v712
      %v716 = vsel %vm455, %v712, %v714
      %719 = vrot.lane.b32.xlu0 %v643, 94
      %v720 = vpop.permute.xlu0 %719
      %721 = vrot.lane.b32.xlu0 %v644, 94
      %v722 = vpop.permute.xlu0 %721
      %723 = vrot.lane.b32.xlu0 %v645, 94
      %v724 = vpop.permute.xlu0 %723
      %v725 = vsel %vm467, %v720, %v722
      %v726 = vsel %vm467, %v722, %v724
      %v730 = vsel %vm473, %v365, 0
      %732 = vmatprep.subr.mxu0 %v644
      %733 = vmatpush1.msra.mxu0 %v643
      %734 = vmatprep.subr.mxu0 %v656
      %735 = vmatpush1.msra.mxu0 %v655
      %736 = vmatprep.subr.mxu0 %v666
      %737 = vmatpush1.msra.mxu0 %v665
      %738 = vmatprep.subr.mxu0 %v676
      %739 = vmatpush1.msra.mxu0 %v675
      %740 = vmatprep.subr.mxu0 %v686
      %741 = vmatpush1.msra.mxu0 %v685
      %742 = vmatprep.subr.mxu0 %v696
      %743 = vmatpush1.msra.mxu0 %v695
      %744 = vmatprep.subr.mxu0 %v706
      %745 = vmatpush1.msra.mxu0 %v705
      %746 = vmatprep.subr.mxu0 %v716
      %747 = vmatpush1.msra.mxu0 %v715
      %748 = vmatprep.subr.mxu0 %v726
      %749 = vmatpush1.msra.mxu0 %v725
      %750 = vmatprep.subr.mxu0 0.0
      %751 = vmatpush1.msra.mxu0 0.0
      %752 = vmatprep.subr.mxu0 0.0
      %753 = vmatpush1.msra.mxu0 0.0
      %754 = vmatprep.subr.mxu0 0.0
      %755 = vmatpush1.msra.mxu0 0.0
      %756 = vmatprep.subr.mxu0 0.0
      %757 = vmatpush1.msra.mxu0 0.0
      %758 = vmatprep.subr.mxu0 0.0
      %759 = vmatpush1.msra.mxu0 0.0
      %760 = vmatprep.subr.mxu0 0.0
      %761 = vmatpush1.msra.mxu0 0.0
      %762 = vmatprep.subr.mxu0 0.0
      %763 = vmatpush1.msra.mxu0 0.0
      %764 = vmatprep.subr.mxu0 0.0
      %765 = vmatpush1.msra.mxu0 0.0
      %766 = vmatprep.subr.mxu0 0.0
      %767 = vmatpush1.msra.mxu0 0.0
      %768 = vmatprep.subr.mxu0 0.0
      %769 = vmatpush1.msra.mxu0 0.0
      %770 = vmatprep.subr.mxu0 0.0
      %771 = vmatpush1.msra.mxu0 0.0
      %772 = vmatprep.subr.mxu0 0.0
      %773 = vmatpush1.msra.mxu0 0.0
      %774 = vmatprep.subr.mxu0 0.0
      %775 = vmatpush1.msra.mxu0 0.0
      %776 = vmatprep.subr.mxu0 0.0
      %777 = vmatpush1.msra.mxu0 0.0
      %778 = vmatprep.subr.mxu0 0.0
      %779 = vmatpush1.msra.mxu0 0.0
      %780 = vmatprep.subr.mxu0 0.0
      %781 = vmatpush1.msra.mxu0 0.0
      %782 = vmatprep.subr.mxu0 0.0
      %783 = vmatpush1.msra.mxu0 0.0
      %784 = vmatprep.subr.mxu0 0.0
      %785 = vmatpush1.msra.mxu0 0.0
      %786 = vmatprep.subr.mxu0 0.0
      %787 = vmatpush1.msra.mxu0 0.0
      %788 = vmatprep.subr.mxu0 0.0
      %789 = vmatpush1.msra.mxu0 0.0
      %790 = vmatprep.subr.mxu0 0.0
      %791 = vmatpush1.msra.mxu0 0.0
      %792 = vmatprep.subr.mxu0 0.0
      %793 = vmatpush1.msra.mxu0 0.0
      %794 = vmatprep.subr.mxu0 0.0
      %795 = vmatpush1.msra.mxu0 0.0
      %796 = vmatprep.mubr.f32.mxu0 0.0
      %797 = vmatmul.mubr.f32.gmra.mrb[0].mxu0 %v730
      %v798 = vpop.f32.mrb[0].mxu0
      %v799 = vadd.f32 0.0, %v798
      %v800 = vpop.f32.mrb[0].mxu0
      %v801 = vadd.f32 0.0, %v800
      %802 = vdwg.mxu0
      %804 = vset.pattern.permute.xlu0 0
      %805 = vperm.xlu0 %804, %v368
      %v806 = vpop.permute.xlu0 %805
      %v808 = vmul.f32 %v799, %v806
      %v809 = vmul.f32 %v801, %v806
      %811 = vset.pattern.permute.xlu0 0
      %812 = vperm.xlu0 %811, %v369
      %v813 = vpop.permute.xlu0 %812
      %v815 = vadd.f32 %v808, %v813
      %v816 = vadd.f32 %v809, %v813
      %v817 = vmax.f32 %v815, 0.0
      %v818 = vmax.f32 %v816, 0.0
      %820 = vset.pattern.permute.xlu0 0
      %821 = vperm.xlu0 %820, %v370
      %v822 = vpop.permute.xlu0 %821
      %v824 = vmul.f32 %v817, %v822
      %v825 = vmul.f32 %v818, %v822
      %v828 = vcombine.low %v824, %v825
      %830 = vst [vmem:[%s305] sm:$0xff] %v828
      %p831 = scmp.lt.s32.totalorder %s19, 1
      %s832 = scalar_select %p831, %s19, 1
      %s833 = smul.addr %s832, 2
      %s834 = smul.addr %s833, 4
      %s835 = scalar_lea.vmem %s8, %s834
      // Predicated region
      $region53: #{special_adapter_v1.1} parent=51 // pred_check
        %p836 = pneg %p210
      $region54: #{special_adapter_v1.1} parent=51 // pred_check_branch
        %838 = sbr.rel (%p836) target = $region56
      $region55: #{special_adapter_v1.1} parent=51 // pred_region
        _
      $region56: #{special_adapter_v1.1} parent=51 // pred_fallthru
        _
    $region52: #{special_adapter_v1.1} parent=5 // pred_fallthru
      _
    %p839 = scmp.le.s32.totalorder 2, %s14
    // Predicated region
    $region57: #{special_adapter_v1.1} parent=5 // pred_check
      %p840 = pneg %p839
    $region58: #{special_adapter_v1.1} parent=5 // pred_check_branch
      %842 = sbr.rel (%p840) target = $region60
    $region59: #{special_adapter_v1.1} parent=5 // pred_region
      %s843 = ssub.s32 %s14, 2
      // Predicated region
      $region61: #{special_adapter_v1.1} parent=59 // pred_check
        %p844 = pneg %p216
      $region62: #{special_adapter_v1.1} parent=59 // pred_check_branch
        %846 = sbr.rel (%p844) target = $region64
      $region63: #{special_adapter_v1.1} parent=59 // pred_region
        %p847 = scmp.lt.s32.totalorder %s20, 1
        %s848 = scalar_select %p847, %s20, 1
        %s849 = smul.addr %s848, 2
        %s850 = smul.addr %s849, 4
        %s851 = scalar_lea.vmem %s8, %s850
      $region64: #{special_adapter_v1.1} parent=59 // pred_fallthru
        _
    $region60: #{special_adapter_v1.1} parent=5 // pred_fallthru
      _
  $region6: #{special_adapter_v1.1} parent=0 // loop_footer
    %s18 = sadd.s32 1, %s14
  $region7: #{special_adapter_v1.1} parent=0 // loop_footer_branch
    %13 = sbr.rel target = $region3
  $region8: #{special_adapter_v1.1} parent=0 // loop_exit
    _

</llo_original>
